<compile_context>
chip_gen: v7x
topology: tpu7x:2x2x1
jax: 0.10.0
libtpu: 0.0.40
codegen_flags: <defaults>
</compile_context>

<pallas_src>
import numpy as np
import jax
import jax.numpy as jnp
from jax.experimental import pallas as pl
from jax.experimental.pallas import tpu as pltpu


# ----------------------------------------------------------------------------
# Fused CBAM kernel (channel attention + spatial attention + application)
# ----------------------------------------------------------------------------
def cbam_kernel(x_ref, w1t_ref, w2t_ref, band_ref, out_ref):
    # x_ref:    (NB, C, HW)  NB batch elements, spatial flattened to lanes
    # w1t_ref:  (C, Cr)      conv1 weight transposed
    # w2t_ref:  (Cr, C)      conv2 weight transposed
    # band_ref: (2*HW, HW)   banded 7x7-conv matrix (weights+shift+padding folded)
    # out_ref:  (NB, C, HW)
    xb = x_ref[...]                                            # (NB, C, HW)

    # ---- channel attention: MLP on pooled per-channel stats (MXU) ----
    avg = jnp.mean(xb, axis=2)                                 # (NB, C)
    mx = jnp.max(xb, axis=2)                                   # (NB, C)
    w1t = w1t_ref[...]                                         # (C, Cr)
    w2t = w2t_ref[...]                                         # (Cr, C)
    h_avg = jnp.maximum(
        jnp.dot(avg, w1t, preferred_element_type=jnp.float32), 0.0)  # (NB, Cr)
    h_max = jnp.maximum(
        jnp.dot(mx, w1t, preferred_element_type=jnp.float32), 0.0)   # (NB, Cr)
    # conv2 is linear (no bias): conv2(relu(a)) + conv2(relu(b)) == conv2(relu(a)+relu(b))
    y = jnp.dot(h_avg + h_max, w2t, preferred_element_type=jnp.float32)  # (NB, C)
    wa = jax.nn.sigmoid(y)                                     # (NB, C) channel weights
    out1 = xb * wa[:, :, None]                                 # (NB, C, HW) stays in VMEM

    # ---- spatial attention: 7x7 "same" conv as ONE banded MXU matmul ----
    pmax = jnp.max(out1, axis=1)                               # (NB, HW) max over C
    pmean = jnp.mean(out1, axis=1)                             # (NB, HW) mean over C
    stacked = jnp.concatenate([pmax, pmean], axis=1)           # (NB, 2*HW)  [max | mean]
    logits = jnp.dot(stacked, band_ref[...],
                     preferred_element_type=jnp.float32)       # (NB, HW)
    sw = jax.nn.sigmoid(logits)                                # (NB, HW) spatial weights

    out_ref[...] = out1 * sw[:, None, :]                       # lane-dense store


# ----------------------------------------------------------------------------
# Host-side helpers
# ----------------------------------------------------------------------------
def _band_structure(H, W, KS):
    """Static scatter indices for the banded conv matrix B (2*HW, HW).

    B[c*HW + j, i] = wsp[0, c, ky, kx]  where j is the (in-bounds) input pixel
    read by tap (ky, kx) when producing output pixel i.  Out-of-image taps are
    simply absent (zero rows), which implements the zero padding.
    """
    P = KS // 2
    HW = H * W
    yi, xi = np.divmod(np.arange(HW), W)
    rows, cols, taps = [], [], []
    for c in range(2):
        for ky in range(KS):
            for kx in range(KS):
                dy, dx = ky - P, kx - P
                yj, xj = yi + dy, xi + dx
                ok = (yj >= 0) & (yj < H) & (xj >= 0) & (xj < W)
                idx = np.nonzero(ok)[0]
                rows.append(c * HW + yj[idx] * W + xj[idx])
                cols.append(idx)
                taps.append(np.full(idx.shape[0], (c * KS + ky) * KS + kx))
    return (np.concatenate(rows).astype(np.int32),
            np.concatenate(cols).astype(np.int32),
            np.concatenate(taps).astype(np.int32))


def _pick_batch_block(N, C, HW, itemsize=4, target_bytes=1 << 20):
    """Largest divisor of N whose (NB, C, HW) block stays near ~1 MB."""
    per = max(C * HW * itemsize, 1)
    nb = int(max(1, min(N, target_bytes // per)))
    while N % nb:
        nb -= 1
    return nb


def cbam_forward(x, w1, w2, wsp):
    """x: (N, C, H, W) f32; w1: (Cr, C); w2: (C, Cr); wsp: (1, 2, KS, KS)."""
    N, C, H, W = x.shape
    Cr = w1.shape[0]
    KS = wsp.shape[-1]
    HW = H * W

    x_flat = x.reshape(N, C, HW)
    w1t = w1.T                                                 # (C, Cr)
    w2t = w2.T                                                 # (Cr, C)

    # Banded conv matrix: structure (rows/cols/taps) is static numpy; only the
    # weight gather + scatter are traced (tiny; XLA hoists it under jit).
    rows, cols, taps = _band_structure(H, W, KS)
    vals = wsp.reshape(-1)[taps]
    band = jnp.zeros((2 * HW, HW), jnp.float32).at[rows, cols].set(
        vals.astype(jnp.float32))

    NB = _pick_batch_block(N, C, HW)

    out_flat = pl.pallas_call(
        cbam_kernel,
        grid=(N // NB,),
        in_specs=[
            pl.BlockSpec((NB, C, HW), lambda n: (n, 0, 0)),
            pl.BlockSpec((C, Cr), lambda n: (0, 0)),
            pl.BlockSpec((Cr, C), lambda n: (0, 0)),
            pl.BlockSpec((2 * HW, HW), lambda n: (0, 0)),
        ],
        out_specs=pl.BlockSpec((NB, C, HW), lambda n: (n, 0, 0)),
        out_shape=jax.ShapeDtypeStruct((N, C, HW), jnp.float32),
        compiler_params=pltpu.CompilerParams(
            dimension_semantics=("parallel",)),  # batch blocks are independent
    )(x_flat, w1t, w2t, band)

    return out_flat.reshape(N, C, H, W)


# ----------------------------------------------------------------------------
# Pure-JAX reference (for correctness check)
# ----------------------------------------------------------------------------
def cbam_reference(x, w1, w2, wsp):
    avg = jnp.mean(x, axis=(2, 3), keepdims=True)
    mx = jnp.max(x, axis=(2, 3), keepdims=True)

    def mlp(v):
        h = jnp.einsum("nchw,oc->nohw", v, w1)
        h = jnp.maximum(h, 0.0)
        return jnp.einsum("nchw,oc->nohw", h, w2)

    wa = jax.nn.sigmoid(mlp(avg) + mlp(mx))
    out1 = wa * x
    maxc = jnp.max(out1, axis=1, keepdims=True)
    meanc = jnp.mean(out1, axis=1, keepdims=True)
    val = jnp.concatenate([maxc, meanc], axis=1)
    P = wsp.shape[-1] // 2
    sw = jax.lax.conv_general_dilated(
        val, wsp, window_strides=(1, 1), padding=((P, P), (P, P)),
        dimension_numbers=("NCHW", "OIHW", "NCHW"))
    return jax.nn.sigmoid(sw) * out1


if __name__ == "__main__":
    N, C, H, W = 2, 16, 16, 16
    ratio, KS = 8, 7
    Cr = C // ratio

    key = jax.random.PRNGKey(0)
    k1, k2, k3, kx = jax.random.split(key, 4)
    w1 = jax.random.normal(k1, (Cr, C), jnp.float32) * (2.0 / C) ** 0.5
    w2 = jax.random.normal(k2, (C, Cr), jnp.float32) * (2.0 / Cr) ** 0.5
    wsp = jax.random.normal(k3, (1, 2, KS, KS), jnp.float32) * (2.0 / (2 * KS * KS)) ** 0.5
    x = jax.random.normal(kx, (N, C, H, W), jnp.float32)

    out = jax.jit(cbam_forward)(x, w1, w2, wsp)
    out = jax.block_until_ready(out)

    ref = cbam_reference(x, w1, w2, wsp)
    assert out.shape == (N, C, H, W)
    assert jnp.allclose(out, ref, atol=1e-4, rtol=1e-4), "mismatch vs reference"

    print("KERNEL_OK")
</pallas_src>

<mosaic_0001>
module attributes {stable_mosaic.version = 11 : i64} {
  func.func @cbam_kernel(%arg0: i32, %arg1: memref<2x16x256xf32, #tpu.memory_space<vmem>>, %arg2: memref<16x2xf32, #tpu.memory_space<vmem>>, %arg3: memref<2x16xf32, #tpu.memory_space<vmem>>, %arg4: memref<512x256xf32, #tpu.memory_space<vmem>>, %arg5: memref<2x16x256xf32, #tpu.memory_space<vmem>>) attributes {dimension_semantics = [#tpu.dimension_semantics<parallel>], iteration_bounds = array<i64: 1>, scalar_prefetch = 0 : i64, scratch_operands = 0 : i64, tpu.core_type = #tpu.core_type<tc>, window_params = [{transform_indices = @transform_0, window_bounds = array<i64: 2, 16, 256>}, {pipeline_mode = #tpu.pipeline_mode<synchronous>, transform_indices = @transform_1, window_bounds = array<i64: 16, 2>}, {pipeline_mode = #tpu.pipeline_mode<synchronous>, transform_indices = @transform_2, window_bounds = array<i64: 2, 16>}, {pipeline_mode = #tpu.pipeline_mode<synchronous>, transform_indices = @transform_3, window_bounds = array<i64: 512, 256>}, {transform_indices = @transform_4, window_bounds = array<i64: 2, 16, 256>}]} {
    %c0 = arith.constant 0 : index
    %c0_0 = arith.constant 0 : index
    %c0_1 = arith.constant 0 : index
    %0 = vector.load %arg1[%c0, %c0_0, %c0_1] : memref<2x16x256xf32, #tpu.memory_space<vmem>>, vector<2x16x256xf32>
    %cst = arith.constant dense<0.000000e+00> : vector<2x16xf32>
    %1 = vector.multi_reduction <add>, %0, %cst [2] : vector<2x16x256xf32> to vector<2x16xf32>
    %cst_2 = arith.constant 2.560000e+02 : f32
    %2 = vector.broadcast %cst_2 : f32 to vector<2x16xf32>
    %3 = arith.divf %1, %2 : vector<2x16xf32>
    %cst_3 = arith.constant dense<0xFF800000> : vector<2x16xf32>
    %4 = vector.multi_reduction <maximumf>, %0, %cst_3 [2] : vector<2x16x256xf32> to vector<2x16xf32>
    %c0_4 = arith.constant 0 : index
    %c0_5 = arith.constant 0 : index
    %5 = vector.load %arg2[%c0_4, %c0_5] : memref<16x2xf32, #tpu.memory_space<vmem>>, vector<16x2xf32>
    %c0_6 = arith.constant 0 : index
    %c0_7 = arith.constant 0 : index
    %6 = vector.load %arg3[%c0_6, %c0_7] : memref<2x16xf32, #tpu.memory_space<vmem>>, vector<2x16xf32>
    %cst_8 = arith.constant dense<0.000000e+00> : vector<2x2xf32>
    %7 = tpu.matmul %3, %5, %cst_8 {dimension_numbers = #tpu.dot_dimension_numbers<[1], [0], [0], [1], [0, 0, 1, 1], [], []>} : vector<2x16xf32>, vector<16x2xf32>, vector<2x2xf32> -> vector<2x2xf32>
    %cst_9 = arith.constant 0.000000e+00 : f32
    %8 = vector.broadcast %cst_9 : f32 to vector<2x2xf32>
    %9 = arith.maximumf %7, %8 : vector<2x2xf32>
    %cst_10 = arith.constant dense<0.000000e+00> : vector<2x2xf32>
    %10 = tpu.matmul %4, %5, %cst_10 {dimension_numbers = #tpu.dot_dimension_numbers<[1], [0], [0], [1], [0, 0, 1, 1], [], []>} : vector<2x16xf32>, vector<16x2xf32>, vector<2x2xf32> -> vector<2x2xf32>
    %cst_11 = arith.constant 0.000000e+00 : f32
    %11 = vector.broadcast %cst_11 : f32 to vector<2x2xf32>
    %12 = arith.maximumf %10, %11 : vector<2x2xf32>
    %13 = arith.addf %9, %12 : vector<2x2xf32>
    %cst_12 = arith.constant dense<0.000000e+00> : vector<2x16xf32>
    %14 = tpu.matmul %13, %6, %cst_12 {dimension_numbers = #tpu.dot_dimension_numbers<[1], [0], [0], [1], [0, 0, 1, 1], [], []>} : vector<2x2xf32>, vector<2x16xf32>, vector<2x16xf32> -> vector<2x16xf32>
    %15 = arith.negf %14 : vector<2x16xf32>
    %16 = math.exp %15 : vector<2x16xf32>
    %cst_13 = arith.constant 1.000000e+00 : f32
    %17 = vector.broadcast %cst_13 : f32 to vector<2x16xf32>
    %18 = arith.addf %17, %16 : vector<2x16xf32>
    %19 = arith.divf %17, %18 : vector<2x16xf32>
    %20 = vector.shape_cast %19 : vector<2x16xf32> to vector<2x16x1xf32>
    %21 = vector.broadcast %20 : vector<2x16x1xf32> to vector<2x16x256xf32>
    %22 = arith.mulf %0, %21 : vector<2x16x256xf32>
    %cst_14 = arith.constant dense<0xFF800000> : vector<2x256xf32>
    %23 = vector.multi_reduction <maximumf>, %22, %cst_14 [1] : vector<2x16x256xf32> to vector<2x256xf32>
    %cst_15 = arith.constant dense<0.000000e+00> : vector<2x256xf32>
    %24 = vector.multi_reduction <add>, %22, %cst_15 [1] : vector<2x16x256xf32> to vector<2x256xf32>
    %cst_16 = arith.constant 1.600000e+01 : f32
    %25 = vector.broadcast %cst_16 : f32 to vector<2x256xf32>
    %26 = arith.divf %24, %25 : vector<2x256xf32>
    %27 = tpu.concatenate %23, %26 in 1 : vector<2x256xf32>, vector<2x256xf32> -> vector<2x512xf32>
    %c0_17 = arith.constant 0 : index
    %c0_18 = arith.constant 0 : index
    %28 = vector.load %arg4[%c0_17, %c0_18] : memref<512x256xf32, #tpu.memory_space<vmem>>, vector<512x256xf32>
    %cst_19 = arith.constant dense<0.000000e+00> : vector<2x256xf32>
    %29 = tpu.matmul %27, %28, %cst_19 {dimension_numbers = #tpu.dot_dimension_numbers<[1], [0], [0], [1], [0, 0, 1, 1], [], []>} : vector<2x512xf32>, vector<512x256xf32>, vector<2x256xf32> -> vector<2x256xf32>
    %30 = arith.negf %29 : vector<2x256xf32>
    %31 = math.exp %30 : vector<2x256xf32>
    %cst_20 = arith.constant 1.000000e+00 : f32
    %32 = vector.broadcast %cst_20 : f32 to vector<2x256xf32>
    %33 = arith.addf %32, %31 : vector<2x256xf32>
    %34 = arith.divf %32, %33 : vector<2x256xf32>
    %35 = vector.shape_cast %34 : vector<2x256xf32> to vector<2x1x256xf32>
    %36 = vector.broadcast %35 : vector<2x1x256xf32> to vector<2x16x256xf32>
    %37 = arith.mulf %22, %36 : vector<2x16x256xf32>
    %c0_21 = arith.constant 0 : index
    %c0_22 = arith.constant 0 : index
    %c0_23 = arith.constant 0 : index
    %38 = vector.load %arg5[%c0_21, %c0_22, %c0_23] : memref<2x16x256xf32, #tpu.memory_space<vmem>>, vector<2x16x256xf32>
    tpu.vector_store %arg5[%c0_21, %c0_22, %c0_23], %37 {strides = array<i32>} : memref<2x16x256xf32, #tpu.memory_space<vmem>>, vector<2x16x256xf32>,
    return
  }
  func.func @transform_0(%arg0: i32) -> (i32, i32, i32) {
    %c0_i32 = arith.constant 0 : i32
    %c0_i32_0 = arith.constant 0 : i32
    %c0_i32_1 = arith.constant 0 : i32
    return %arg0, %c0_i32, %c0_i32_0 : i32, i32, i32
  }
  func.func @transform_1(%arg0: i32) -> (i32, i32) {
    %c0_i32 = arith.constant 0 : i32
    %c0_i32_0 = arith.constant 0 : i32
    %c0_i32_1 = arith.constant 0 : i32
    return %c0_i32, %c0_i32_0 : i32, i32
  }
  func.func @transform_2(%arg0: i32) -> (i32, i32) {
    %c0_i32 = arith.constant 0 : i32
    %c0_i32_0 = arith.constant 0 : i32
    %c0_i32_1 = arith.constant 0 : i32
    return %c0_i32, %c0_i32_0 : i32, i32
  }
  func.func @transform_3(%arg0: i32) -> (i32, i32) {
    %c0_i32 = arith.constant 0 : i32
    %c0_i32_0 = arith.constant 0 : i32
    %c0_i32_1 = arith.constant 0 : i32
    return %c0_i32, %c0_i32_0 : i32, i32
  }
  func.func @transform_4(%arg0: i32) -> (i32, i32, i32) {
    %c0_i32 = arith.constant 0 : i32
    %c0_i32_0 = arith.constant 0 : i32
    %c0_i32_1 = arith.constant 0 : i32
    return %arg0, %c0_i32, %c0_i32_0 : i32, i32, i32
  }
}

</mosaic_0001>

<llo_original>
// kernel: cbam_forward.1
$region0: #{cbam_forward.1}
  #allocation0 [shape = 'u32[]', space=smem, size = 0x4, offset = 0x4, fixed_abs, tag = 'smem constant byte address 0x4 - core index']
  #allocation1 [shape = 'u32[144,128]{1,0:T(1,128)}', space=vmem, size = 0x12000, scoped, tag = 'internal scratch']
  %s0 = inlined_call_operand.vmem [shape: f32[2,16,256], index: 0, kind: input, shape index: {}]
  %s1 = inlined_call_operand.vmem [shape: f32[16,2], index: 1, kind: input, shape index: {}]
  %s2 = inlined_call_operand.vmem [shape: f32[2,16], index: 2, kind: input, shape index: {}]
  %s3 = inlined_call_operand.vmem [shape: f32[512,256], index: 3, kind: input, shape index: {}]
  %s4 = inlined_call_operand.vmem [shape: f32[2,16,256], index: 4, kind: output, shape index: {}]
  %s5 = sld [smem:[#allocation0]]
  $region26: #{cbam_forward.1} parent=0
    _
  %s7 = ssub.s32 1, %s5
  %s8 = scalar_select 0, %s7, %s5
  // Predicated region
  $region2: #{cbam_forward.1} parent=0 // pred_check
    _
  $region3: #{cbam_forward.1} parent=0 // pred_check_branch
    %10 = sbr.rel (0) target = $region5
  $region4: #{cbam_forward.1} parent=0 // pred_region
    _
  $region5: #{cbam_forward.1} parent=0 // pred_fallthru
    _
  // Predicated region
  $region6: #{cbam_forward.1} parent=0 // pred_check
    _
  $region7: #{cbam_forward.1} parent=0 // pred_check_branch
    %12 = sbr.rel (0) target = $region9
  $region8: #{cbam_forward.1} parent=0 // pred_region
    _
  $region9: #{cbam_forward.1} parent=0 // pred_fallthru
    _
  // Predicated region
  $region10: #{cbam_forward.1} parent=0 // pred_check
    _
  $region11: #{cbam_forward.1} parent=0 // pred_check_branch
    %14 = sbr.rel (0) target = $region13
  $region12: #{cbam_forward.1} parent=0 // pred_region
    _
  $region13: #{cbam_forward.1} parent=0 // pred_fallthru
    _
  // Predicated region
  $region14: #{cbam_forward.1} parent=0 // pred_check
    _
  $region15: #{cbam_forward.1} parent=0 // pred_check_branch
    %16 = sbr.rel (0) target = $region17
  $region16: #{cbam_forward.1} parent=0 // pred_region
    _
  $region17: #{cbam_forward.1} parent=0 // pred_fallthru
    _
  %v17 = vld [vmem:[%s0] sm:$0xff]
  %v18 = vld [vmem:[%s0 + $0x8] sm:$0xff]
  %v19 = vld [vmem:[%s0 + $0x10] sm:$0xff]
  %v20 = vld [vmem:[%s0 + $0x18] sm:$0xff]
  %v21 = vld [vmem:[%s0 + $0x20] sm:$0xff]
  %v22 = vld [vmem:[%s0 + $0x28] sm:$0xff]
  %v23 = vld [vmem:[%s0 + $0x30] sm:$0xff]
  %v24 = vld [vmem:[%s0 + $0x38] sm:$0xff]
  %v25 = vadd.f32 %v17, %v18
  %26 = vadd.xlane.f32.xlu0 %v25
  %v27 = vpop.xlane.xlu0 %26
  %v28 = vadd.f32 %v19, %v20
  %29 = vadd.xlane.f32.xlu0 %v28
  %v30 = vpop.xlane.xlu0 %29
  %v31 = vadd.f32 %v21, %v22
  %32 = vadd.xlane.f32.xlu0 %v31
  %v33 = vpop.xlane.xlu0 %32
  %v34 = vadd.f32 %v23, %v24
  %35 = vadd.xlane.f32.xlu0 %v34
  %v36 = vpop.xlane.xlu0 %35
  %v37 = vrcp.pop 256.0
  %v38 = vmul.f32 %v27, %v37
  %v39 = vmul.f32 %v30, %v37
  %v40 = vmul.f32 %v33, %v37
  %v41 = vmul.f32 %v36, %v37
  %v42 = vmax.f32 %v17, %v18
  %43 = vmax.xlane.f32.xlu0 %v42
  %v44 = vpop.xlane.xlu0 %43
  %v45 = vmax.f32 %v19, %v20
  %46 = vmax.xlane.f32.xlu0 %v45
  %v47 = vpop.xlane.xlu0 %46
  %v48 = vmax.f32 %v21, %v22
  %49 = vmax.xlane.f32.xlu0 %v48
  %v50 = vpop.xlane.xlu0 %49
  %v51 = vmax.f32 %v23, %v24
  %52 = vmax.xlane.f32.xlu0 %v51
  %v53 = vpop.xlane.xlu0 %52
  %v54 = vld [vmem:[%s1] sm:$0xff]
  %v55 = vld [vmem:[%s1 + $0x8] sm:$0xff]
  %v56 = vld [vmem:[%s2] sm:$0x3]
  %v61 = vlaneseq
  %v62 = vand.u32 %v61, 127
  %v63 = vlaneseq
  %v64 = vshrl.u32 %v63, 7
  %v65 = vsub.s32 %v62, %v64
  %v66 = vrot.slane %v38, %v65
  %v67 = vadd.s32 %v62, 4294967288
  %v68 = vlaneseq
  %v69 = vshrl.u32 %v68, 7
  %v70 = vsub.s32 %v67, %v69
  %v71 = vrot.slane %v39, %v70
  %vm72 = vcmask 130112
  %v73 = vsel %vm72, %v71, %v66
  %v74 = vlaneseq
  %v75 = vshrl.u32 %v74, 7
  %v76 = vsub.s32 %v62, %v75
  %v77 = vrot.slane %v40, %v76
  %v78 = vlaneseq
  %v79 = vshrl.u32 %v78, 7
  %v80 = vsub.s32 %v67, %v79
  %v81 = vrot.slane %v41, %v80
  %v82 = vsel %vm72, %v81, %v77
  %vm83 = vcmask 1041409
  %v84 = vsel %vm83, %v82, %v73
  %vm85 = vcmask 130048
  %v86 = vsel %vm85, %v84, 0
  %88 = vmatprep.subr.mxu0 0.0
  %89 = vmatpush1.msra.mxu0 %v54
  %90 = vmatprep.subr.mxu0 0.0
  %91 = vmatpush1.msra.mxu0 %v55
  %92 = vmatprep.subr.mxu0 0.0
  %93 = vmatpush1.msra.mxu0 0.0
  %94 = vmatprep.subr.mxu0 0.0
  %95 = vmatpush1.msra.mxu0 0.0
  %96 = vmatprep.subr.mxu0 0.0
  %97 = vmatpush1.msra.mxu0 0.0
  %98 = vmatprep.subr.mxu0 0.0
  %99 = vmatpush1.msra.mxu0 0.0
  %100 = vmatprep.subr.mxu0 0.0
  %101 = vmatpush1.msra.mxu0 0.0
  %102 = vmatprep.subr.mxu0 0.0
  %103 = vmatpush1.msra.mxu0 0.0
  %104 = vmatprep.subr.mxu0 0.0
  %105 = vmatpush1.msra.mxu0 0.0
  %106 = vmatprep.subr.mxu0 0.0
  %107 = vmatpush1.msra.mxu0 0.0
  %108 = vmatprep.subr.mxu0 0.0
  %109 = vmatpush1.msra.mxu0 0.0
  %110 = vmatprep.subr.mxu0 0.0
  %111 = vmatpush1.msra.mxu0 0.0
  %112 = vmatprep.subr.mxu0 0.0
  %113 = vmatpush1.msra.mxu0 0.0
  %114 = vmatprep.subr.mxu0 0.0
  %115 = vmatpush1.msra.mxu0 0.0
  %116 = vmatprep.subr.mxu0 0.0
  %117 = vmatpush1.msra.mxu0 0.0
  %118 = vmatprep.subr.mxu0 0.0
  %119 = vmatpush1.msra.mxu0 0.0
  %120 = vmatprep.subr.mxu0 0.0
  %121 = vmatpush1.msra.mxu0 0.0
  %122 = vmatprep.subr.mxu0 0.0
  %123 = vmatpush1.msra.mxu0 0.0
  %124 = vmatprep.subr.mxu0 0.0
  %125 = vmatpush1.msra.mxu0 0.0
  %126 = vmatprep.subr.mxu0 0.0
  %127 = vmatpush1.msra.mxu0 0.0
  %128 = vmatprep.subr.mxu0 0.0
  %129 = vmatpush1.msra.mxu0 0.0
  %130 = vmatprep.subr.mxu0 0.0
  %131 = vmatpush1.msra.mxu0 0.0
  %132 = vmatprep.subr.mxu0 0.0
  %133 = vmatpush1.msra.mxu0 0.0
  %134 = vmatprep.subr.mxu0 0.0
  %135 = vmatpush1.msra.mxu0 0.0
  %136 = vmatprep.subr.mxu0 0.0
  %137 = vmatpush1.msra.mxu0 0.0
  %138 = vmatprep.subr.mxu0 0.0
  %139 = vmatpush1.msra.mxu0 0.0
  %140 = vmatprep.subr.mxu0 0.0
  %141 = vmatpush1.msra.mxu0 0.0
  %142 = vmatprep.subr.mxu0 0.0
  %143 = vmatpush1.msra.mxu0 0.0
  %144 = vmatprep.subr.mxu0 0.0
  %145 = vmatpush1.msra.mxu0 0.0
  %146 = vmatprep.subr.mxu0 0.0
  %147 = vmatpush1.msra.mxu0 0.0
  %148 = vmatprep.subr.mxu0 0.0
  %149 = vmatpush1.msra.mxu0 0.0
  %150 = vmatprep.subr.mxu0 0.0
  %151 = vmatpush1.msra.mxu0 0.0
  %152 = vmatprep.mubr.f32.mxu0 0.0
  %153 = vmatmul.mubr.f32.gmra.mrb[0].mxu0 %v86
  %v154 = vpop.f32.mrb[0].mxu0
  %v155 = vadd.f32 0.0, %v154
  %v156 = vpop.f32.mrb[0].mxu0
  %157 = vdwg.mxu0
  %v158 = vmax.f32 %v155, 0.0
  %v163 = vlaneseq
  %v164 = vshrl.u32 %v163, 7
  %v165 = vsub.s32 %v62, %v164
  %v166 = vrot.slane %v44, %v165
  %v167 = vlaneseq
  %v168 = vshrl.u32 %v167, 7
  %v169 = vsub.s32 %v67, %v168
  %v170 = vrot.slane %v47, %v169
  %v171 = vsel %vm72, %v170, %v166
  %v172 = vlaneseq
  %v173 = vshrl.u32 %v172, 7
  %v174 = vsub.s32 %v62, %v173
  %v175 = vrot.slane %v50, %v174
  %v176 = vlaneseq
  %v177 = vshrl.u32 %v176, 7
  %v178 = vsub.s32 %v67, %v177
  %v179 = vrot.slane %v53, %v178
  %v180 = vsel %vm72, %v179, %v175
  %v181 = vsel %vm83, %v180, %v171
  %v182 = vsel %vm85, %v181, 0
  %184 = vmatprep.subr.mxu0 0.0
  %185 = vmatpush1.msra.mxu0 %v54
  %186 = vmatprep.subr.mxu0 0.0
  %187 = vmatpush1.msra.mxu0 %v55
  %188 = vmatprep.subr.mxu0 0.0
  %189 = vmatpush1.msra.mxu0 0.0
  %190 = vmatprep.subr.mxu0 0.0
  %191 = vmatpush1.msra.mxu0 0.0
  %192 = vmatprep.subr.mxu0 0.0
  %193 = vmatpush1.msra.mxu0 0.0
  %194 = vmatprep.subr.mxu0 0.0
  %195 = vmatpush1.msra.mxu0 0.0
  %196 = vmatprep.subr.mxu0 0.0
  %197 = vmatpush1.msra.mxu0 0.0
  %198 = vmatprep.subr.mxu0 0.0
  %199 = vmatpush1.msra.mxu0 0.0
  %200 = vmatprep.subr.mxu0 0.0
  %201 = vmatpush1.msra.mxu0 0.0
  %202 = vmatprep.subr.mxu0 0.0
  %203 = vmatpush1.msra.mxu0 0.0
  %204 = vmatprep.subr.mxu0 0.0
  %205 = vmatpush1.msra.mxu0 0.0
  %206 = vmatprep.subr.mxu0 0.0
  %207 = vmatpush1.msra.mxu0 0.0
  %208 = vmatprep.subr.mxu0 0.0
  %209 = vmatpush1.msra.mxu0 0.0
  %210 = vmatprep.subr.mxu0 0.0
  %211 = vmatpush1.msra.mxu0 0.0
  %212 = vmatprep.subr.mxu0 0.0
  %213 = vmatpush1.msra.mxu0 0.0
  %214 = vmatprep.subr.mxu0 0.0
  %215 = vmatpush1.msra.mxu0 0.0
  %216 = vmatprep.subr.mxu0 0.0
  %217 = vmatpush1.msra.mxu0 0.0
  %218 = vmatprep.subr.mxu0 0.0
  %219 = vmatpush1.msra.mxu0 0.0
  %220 = vmatprep.subr.mxu0 0.0
  %221 = vmatpush1.msra.mxu0 0.0
  %222 = vmatprep.subr.mxu0 0.0
  %223 = vmatpush1.msra.mxu0 0.0
  %224 = vmatprep.subr.mxu0 0.0
  %225 = vmatpush1.msra.mxu0 0.0
  %226 = vmatprep.subr.mxu0 0.0
  %227 = vmatpush1.msra.mxu0 0.0
  %228 = vmatprep.subr.mxu0 0.0
  %229 = vmatpush1.msra.mxu0 0.0
  %230 = vmatprep.subr.mxu0 0.0
  %231 = vmatpush1.msra.mxu0 0.0
  %232 = vmatprep.subr.mxu0 0.0
  %233 = vmatpush1.msra.mxu0 0.0
  %234 = vmatprep.subr.mxu0 0.0
  %235 = vmatpush1.msra.mxu0 0.0
  %236 = vmatprep.subr.mxu0 0.0
  %237 = vmatpush1.msra.mxu0 0.0
  %238 = vmatprep.subr.mxu0 0.0
  %239 = vmatpush1.msra.mxu0 0.0
  %240 = vmatprep.subr.mxu0 0.0
  %241 = vmatpush1.msra.mxu0 0.0
  %242 = vmatprep.subr.mxu0 0.0
  %243 = vmatpush1.msra.mxu0 0.0
  %244 = vmatprep.subr.mxu0 0.0
  %245 = vmatpush1.msra.mxu0 0.0
  %246 = vmatprep.subr.mxu0 0.0
  %247 = vmatpush1.msra.mxu0 0.0
  %248 = vmatprep.mubr.f32.mxu0 0.0
  %249 = vmatmul.mubr.f32.gmra.mrb[0].mxu0 %v182
  %v250 = vpop.f32.mrb[0].mxu0
  %v251 = vadd.f32 0.0, %v250
  %v252 = vpop.f32.mrb[0].mxu0
  %253 = vdwg.mxu0
  %v254 = vmax.f32 %v251, 0.0
  %v255 = vadd.f32 %v158, %v254
  %vm256 = vcmask 15360
  %v258 = vsel %vm256, %v255, 0
  %vm260 = vcmask 1041408
  %v262 = vsel %vm260, %v56, 0
  %264 = vmatprep.subr.mxu0 0.0
  %265 = vmatpush1.msra.mxu0 %v262
  %266 = vmatprep.subr.mxu0 0.0
  %267 = vmatpush1.msra.mxu0 0.0
  %268 = vmatprep.subr.mxu0 0.0
  %269 = vmatpush1.msra.mxu0 0.0
  %270 = vmatprep.subr.mxu0 0.0
  %271 = vmatpush1.msra.mxu0 0.0
  %272 = vmatprep.subr.mxu0 0.0
  %273 = vmatpush1.msra.mxu0 0.0
  %274 = vmatprep.subr.mxu0 0.0
  %275 = vmatpush1.msra.mxu0 0.0
  %276 = vmatprep.subr.mxu0 0.0
  %277 = vmatpush1.msra.mxu0 0.0
  %278 = vmatprep.subr.mxu0 0.0
  %279 = vmatpush1.msra.mxu0 0.0
  %280 = vmatprep.subr.mxu0 0.0
  %281 = vmatpush1.msra.mxu0 0.0
  %282 = vmatprep.subr.mxu0 0.0
  %283 = vmatpush1.msra.mxu0 0.0
  %284 = vmatprep.subr.mxu0 0.0
  %285 = vmatpush1.msra.mxu0 0.0
  %286 = vmatprep.subr.mxu0 0.0
  %287 = vmatpush1.msra.mxu0 0.0
  %288 = vmatprep.subr.mxu0 0.0
  %289 = vmatpush1.msra.mxu0 0.0
  %290 = vmatprep.subr.mxu0 0.0
  %291 = vmatpush1.msra.mxu0 0.0
  %292 = vmatprep.subr.mxu0 0.0
  %293 = vmatpush1.msra.mxu0 0.0
  %294 = vmatprep.subr.mxu0 0.0
  %295 = vmatpush1.msra.mxu0 0.0
  %296 = vmatprep.subr.mxu0 0.0
  %297 = vmatpush1.msra.mxu0 0.0
  %298 = vmatprep.subr.mxu0 0.0
  %299 = vmatpush1.msra.mxu0 0.0
  %300 = vmatprep.subr.mxu0 0.0
  %301 = vmatpush1.msra.mxu0 0.0
  %302 = vmatprep.subr.mxu0 0.0
  %303 = vmatpush1.msra.mxu0 0.0
  %304 = vmatprep.subr.mxu0 0.0
  %305 = vmatpush1.msra.mxu0 0.0
  %306 = vmatprep.subr.mxu0 0.0
  %307 = vmatpush1.msra.mxu0 0.0
  %308 = vmatprep.subr.mxu0 0.0
  %309 = vmatpush1.msra.mxu0 0.0
  %310 = vmatprep.subr.mxu0 0.0
  %311 = vmatpush1.msra.mxu0 0.0
  %312 = vmatprep.subr.mxu0 0.0
  %313 = vmatpush1.msra.mxu0 0.0
  %314 = vmatprep.subr.mxu0 0.0
  %315 = vmatpush1.msra.mxu0 0.0
  %316 = vmatprep.subr.mxu0 0.0
  %317 = vmatpush1.msra.mxu0 0.0
  %318 = vmatprep.subr.mxu0 0.0
  %319 = vmatpush1.msra.mxu0 0.0
  %320 = vmatprep.subr.mxu0 0.0
  %321 = vmatpush1.msra.mxu0 0.0
  %322 = vmatprep.subr.mxu0 0.0
  %323 = vmatpush1.msra.mxu0 0.0
  %324 = vmatprep.subr.mxu0 0.0
  %325 = vmatpush1.msra.mxu0 0.0
  %326 = vmatprep.subr.mxu0 0.0
  %327 = vmatpush1.msra.mxu0 0.0
  %328 = vmatprep.mubr.f32.mxu0 0.0
  %329 = vmatmul.mubr.f32.gmra.mrb[0].mxu0 %v258
  %v330 = vpop.f32.mrb[0].mxu0
  %v331 = vadd.f32 0.0, %v330
  %v332 = vpop.f32.mrb[0].mxu0
  %333 = vdwg.mxu0
  %v334 = vxor.u32 %v331, 2147483648
  %v335 = vmul.f32 %v334, 1.442695
  %v336 = vpow.pop %v335
  %v337 = vadd.f32 %v336, 1.0
  %v338 = vrcp.pop %v337
  %v339 = vmul.f32 1.0, %v338
  %v340 = vlaneseq
  %v341 = vshrl.u32 %v340, 7
  %v342 = vsub.s32 0, %v341
  %v343 = vrot.slane %v339, %v342
  %345 = vbcast.lane.b32.xlu0 %v343, 256
  %v346 = vpop.permute.xlu0 %345
  %s348 = sor.u32 256, 8
  %349 = vbcast.lane.b32.xlu0 %v343, %s348
  %v350 = vpop.permute.xlu0 %349
  %v351 = vlaneseq
  %v352 = vshrl.u32 %v351, 7
  %v353 = vsub.s32 1, %v352
  %v354 = vrot.slane %v339, %v353
  %356 = vbcast.lane.b32.xlu0 %v354, 256
  %v357 = vpop.permute.xlu0 %356
  %s359 = sor.u32 256, 8
  %360 = vbcast.lane.b32.xlu0 %v354, %s359
  %v361 = vpop.permute.xlu0 %360
  %v362 = vmul.f32 %v17, %v346
  %v363 = vmul.f32 %v18, %v346
  %v364 = vmul.f32 %v19, %v350
  %v365 = vmul.f32 %v20, %v350
  %v366 = vmul.f32 %v21, %v357
  %v367 = vmul.f32 %v22, %v357
  %v368 = vmul.f32 %v23, %v361
  %v369 = vmul.f32 %v24, %v361
  %v370 = vmax.f32 %v362, %v364
  %v371 = vrot.slane %v370, 4
  %v372 = vmax.f32 %v370, %v371
  %v373 = vrot.slane %v372, 2
  %v374 = vmax.f32 %v372, %v373
  %v375 = vrot.slane %v374, 1
  %v376 = vmax.f32 %v374, %v375
  %v377 = vmax.f32 %v363, %v365
  %v378 = vrot.slane %v377, 4
  %v379 = vmax.f32 %v377, %v378
  %v380 = vrot.slane %v379, 2
  %v381 = vmax.f32 %v379, %v380
  %v382 = vrot.slane %v381, 1
  %v383 = vmax.f32 %v381, %v382
  %v384 = vmax.f32 %v366, %v368
  %v385 = vrot.slane %v384, 4
  %v386 = vmax.f32 %v384, %v385
  %v387 = vrot.slane %v386, 2
  %v388 = vmax.f32 %v386, %v387
  %v389 = vrot.slane %v388, 1
  %v390 = vmax.f32 %v388, %v389
  %v391 = vmax.f32 %v367, %v369
  %v392 = vrot.slane %v391, 4
  %v393 = vmax.f32 %v391, %v392
  %v394 = vrot.slane %v393, 2
  %v395 = vmax.f32 %v393, %v394
  %v396 = vrot.slane %v395, 1
  %v397 = vmax.f32 %v395, %v396
  %v398 = vadd.f32 %v362, %v364
  %v399 = vrot.slane %v398, 4
  %v400 = vadd.f32 %v398, %v399
  %v401 = vrot.slane %v400, 2
  %v402 = vadd.f32 %v400, %v401
  %v403 = vrot.slane %v402, 1
  %v404 = vadd.f32 %v402, %v403
  %v405 = vadd.f32 %v363, %v365
  %v406 = vrot.slane %v405, 4
  %v407 = vadd.f32 %v405, %v406
  %v408 = vrot.slane %v407, 2
  %v409 = vadd.f32 %v407, %v408
  %v410 = vrot.slane %v409, 1
  %v411 = vadd.f32 %v409, %v410
  %v412 = vadd.f32 %v366, %v368
  %v413 = vrot.slane %v412, 4
  %v414 = vadd.f32 %v412, %v413
  %v415 = vrot.slane %v414, 2
  %v416 = vadd.f32 %v414, %v415
  %v417 = vrot.slane %v416, 1
  %v418 = vadd.f32 %v416, %v417
  %v419 = vadd.f32 %v367, %v369
  %v420 = vrot.slane %v419, 4
  %v421 = vadd.f32 %v419, %v420
  %v422 = vrot.slane %v421, 2
  %v423 = vadd.f32 %v421, %v422
  %v424 = vrot.slane %v423, 1
  %v425 = vadd.f32 %v423, %v424
  %v426 = vrcp.pop 16.0
  %v427 = vmul.f32 %v404, %v426
  %v428 = vmul.f32 %v411, %v426
  %v429 = vmul.f32 %v418, %v426
  %v430 = vmul.f32 %v425, %v426
  %v435 = vsel %vm83, %v390, %v376
  %v436 = vsel %vm83, %v397, %v383
  %v443 = vsel %vm83, %v429, %v427
  %v444 = vsel %vm83, %v430, %v428
  %v447 = vld [vmem:[%s3] sm:$0xff]
  %v448 = vld [vmem:[%s3 + $0x8] sm:$0xff]
  %v449 = vld [vmem:[%s3 + $0x10] sm:$0xff]
  %v450 = vld [vmem:[%s3 + $0x18] sm:$0xff]
  %v451 = vld [vmem:[%s3 + $0x20] sm:$0xff]
  %v452 = vld [vmem:[%s3 + $0x28] sm:$0xff]
  %v453 = vld [vmem:[%s3 + $0x30] sm:$0xff]
  %v454 = vld [vmem:[%s3 + $0x38] sm:$0xff]
  %v455 = vld [vmem:[%s3 + $0x40] sm:$0xff]
  %v456 = vld [vmem:[%s3 + $0x48] sm:$0xff]
  %v457 = vld [vmem:[%s3 + $0x50] sm:$0xff]
  %v458 = vld [vmem:[%s3 + $0x58] sm:$0xff]
  %v459 = vld [vmem:[%s3 + $0x60] sm:$0xff]
  %v460 = vld [vmem:[%s3 + $0x68] sm:$0xff]
  %v461 = vld [vmem:[%s3 + $0x70] sm:$0xff]
  %v462 = vld [vmem:[%s3 + $0x78] sm:$0xff]
  %v463 = vld [vmem:[%s3 + $0x80] sm:$0xff]
  %v464 = vld [vmem:[%s3 + $0x88] sm:$0xff]
  %v465 = vld [vmem:[%s3 + $0x90] sm:$0xff]
  %v466 = vld [vmem:[%s3 + $0x98] sm:$0xff]
  %v467 = vld [vmem:[%s3 + $0xa0] sm:$0xff]
  %v468 = vld [vmem:[%s3 + $0xa8] sm:$0xff]
  %v469 = vld [vmem:[%s3 + $0xb0] sm:$0xff]
  %v470 = vld [vmem:[%s3 + $0xb8] sm:$0xff]
  %v471 = vld [vmem:[%s3 + $0xc0] sm:$0xff]
  %v472 = vld [vmem:[%s3 + $0xc8] sm:$0xff]
  %v473 = vld [vmem:[%s3 + $0xd0] sm:$0xff]
  %v474 = vld [vmem:[%s3 + $0xd8] sm:$0xff]
  %v475 = vld [vmem:[%s3 + $0xe0] sm:$0xff]
  %v476 = vld [vmem:[%s3 + $0xe8] sm:$0xff]
  %v477 = vld [vmem:[%s3 + $0xf0] sm:$0xff]
  %v478 = vld [vmem:[%s3 + $0xf8] sm:$0xff]
  %v479 = vld [vmem:[%s3 + $0x100] sm:$0xff]
  %v480 = vld [vmem:[%s3 + $0x108] sm:$0xff]
  %v481 = vld [vmem:[%s3 + $0x110] sm:$0xff]
  %v482 = vld [vmem:[%s3 + $0x118] sm:$0xff]
  %v483 = vld [vmem:[%s3 + $0x120] sm:$0xff]
  %v484 = vld [vmem:[%s3 + $0x128] sm:$0xff]
  %v485 = vld [vmem:[%s3 + $0x130] sm:$0xff]
  %v486 = vld [vmem:[%s3 + $0x138] sm:$0xff]
  %v487 = vld [vmem:[%s3 + $0x140] sm:$0xff]
  %v488 = vld [vmem:[%s3 + $0x148] sm:$0xff]
  %v489 = vld [vmem:[%s3 + $0x150] sm:$0xff]
  %v490 = vld [vmem:[%s3 + $0x158] sm:$0xff]
  %v491 = vld [vmem:[%s3 + $0x160] sm:$0xff]
  %v492 = vld [vmem:[%s3 + $0x168] sm:$0xff]
  %v493 = vld [vmem:[%s3 + $0x170] sm:$0xff]
  %v494 = vld [vmem:[%s3 + $0x178] sm:$0xff]
  %v495 = vld [vmem:[%s3 + $0x180] sm:$0xff]
  %v496 = vld [vmem:[%s3 + $0x188] sm:$0xff]
  %v497 = vld [vmem:[%s3 + $0x190] sm:$0xff]
  %v498 = vld [vmem:[%s3 + $0x198] sm:$0xff]
  %v499 = vld [vmem:[%s3 + $0x1a0] sm:$0xff]
  %v500 = vld [vmem:[%s3 + $0x1a8] sm:$0xff]
  %v501 = vld [vmem:[%s3 + $0x1b0] sm:$0xff]
  %v502 = vld [vmem:[%s3 + $0x1b8] sm:$0xff]
  %v503 = vld [vmem:[%s3 + $0x1c0] sm:$0xff]
  %v504 = vld [vmem:[%s3 + $0x1c8] sm:$0xff]
  %v505 = vld [vmem:[%s3 + $0x1d0] sm:$0xff]
  %v506 = vld [vmem:[%s3 + $0x1d8] sm:$0xff]
  %v507 = vld [vmem:[%s3 + $0x1e0] sm:$0xff]
  %v508 = vld [vmem:[%s3 + $0x1e8] sm:$0xff]
  %v509 = vld [vmem:[%s3 + $0x1f0] sm:$0xff]
  %v510 = vld [vmem:[%s3 + $0x1f8] sm:$0xff]
  %v511 = vld [vmem:[%s3 + $0x200] sm:$0xff]
  %v512 = vld [vmem:[%s3 + $0x208] sm:$0xff]
  %v513 = vld [vmem:[%s3 + $0x210] sm:$0xff]
  %v514 = vld [vmem:[%s3 + $0x218] sm:$0xff]
  %v515 = vld [vmem:[%s3 + $0x220] sm:$0xff]
  %v516 = vld [vmem:[%s3 + $0x228] sm:$0xff]
  %v517 = vld [vmem:[%s3 + $0x230] sm:$0xff]
  %v518 = vld [vmem:[%s3 + $0x238] sm:$0xff]
  %v519 = vld [vmem:[%s3 + $0x240] sm:$0xff]
  %v520 = vld [vmem:[%s3 + $0x248] sm:$0xff]
  %v521 = vld [vmem:[%s3 + $0x250] sm:$0xff]
  %v522 = vld [vmem:[%s3 + $0x258] sm:$0xff]
  %v523 = vld [vmem:[%s3 + $0x260] sm:$0xff]
  %v524 = vld [vmem:[%s3 + $0x268] sm:$0xff]
  %v525 = vld [vmem:[%s3 + $0x270] sm:$0xff]
  %v526 = vld [vmem:[%s3 + $0x278] sm:$0xff]
  %v527 = vld [vmem:[%s3 + $0x280] sm:$0xff]
  %v528 = vld [vmem:[%s3 + $0x288] sm:$0xff]
  %v529 = vld [vmem:[%s3 + $0x290] sm:$0xff]
  %v530 = vld [vmem:[%s3 + $0x298] sm:$0xff]
  %v531 = vld [vmem:[%s3 + $0x2a0] sm:$0xff]
  %v532 = vld [vmem:[%s3 + $0x2a8] sm:$0xff]
  %v533 = vld [vmem:[%s3 + $0x2b0] sm:$0xff]
  %v534 = vld [vmem:[%s3 + $0x2b8] sm:$0xff]
  %v535 = vld [vmem:[%s3 + $0x2c0] sm:$0xff]
  %v536 = vld [vmem:[%s3 + $0x2c8] sm:$0xff]
  %v537 = vld [vmem:[%s3 + $0x2d0] sm:$0xff]
  %v538 = vld [vmem:[%s3 + $0x2d8] sm:$0xff]
  %v539 = vld [vmem:[%s3 + $0x2e0] sm:$0xff]
  %v540 = vld [vmem:[%s3 + $0x2e8] sm:$0xff]
  %v541 = vld [vmem:[%s3 + $0x2f0] sm:$0xff]
  %v542 = vld [vmem:[%s3 + $0x2f8] sm:$0xff]
  %v543 = vld [vmem:[%s3 + $0x300] sm:$0xff]
  %v544 = vld [vmem:[%s3 + $0x308] sm:$0xff]
  %v545 = vld [vmem:[%s3 + $0x310] sm:$0xff]
  %v546 = vld [vmem:[%s3 + $0x318] sm:$0xff]
  %v547 = vld [vmem:[%s3 + $0x320] sm:$0xff]
  %v548 = vld [vmem:[%s3 + $0x328] sm:$0xff]
  %v549 = vld [vmem:[%s3 + $0x330] sm:$0xff]
  %v550 = vld [vmem:[%s3 + $0x338] sm:$0xff]
  %v551 = vld [vmem:[%s3 + $0x340] sm:$0xff]
  %v552 = vld [vmem:[%s3 + $0x348] sm:$0xff]
  %v553 = vld [vmem:[%s3 + $0x350] sm:$0xff]
  %v554 = vld [vmem:[%s3 + $0x358] sm:$0xff]
  %v555 = vld [vmem:[%s3 + $0x360] sm:$0xff]
  %v556 = vld [vmem:[%s3 + $0x368] sm:$0xff]
  %v557 = vld [vmem:[%s3 + $0x370] sm:$0xff]
  %v558 = vld [vmem:[%s3 + $0x378] sm:$0xff]
  %v559 = vld [vmem:[%s3 + $0x380] sm:$0xff]
  %v560 = vld [vmem:[%s3 + $0x388] sm:$0xff]
  %v561 = vld [vmem:[%s3 + $0x390] sm:$0xff]
  %v562 = vld [vmem:[%s3 + $0x398] sm:$0xff]
  %v563 = vld [vmem:[%s3 + $0x3a0] sm:$0xff]
  %v564 = vld [vmem:[%s3 + $0x3a8] sm:$0xff]
  %v565 = vld [vmem:[%s3 + $0x3b0] sm:$0xff]
  %v566 = vld [vmem:[%s3 + $0x3b8] sm:$0xff]
  %v567 = vld [vmem:[%s3 + $0x3c0] sm:$0xff]
  %v568 = vld [vmem:[%s3 + $0x3c8] sm:$0xff]
  %v569 = vld [vmem:[%s3 + $0x3d0] sm:$0xff]
  %v570 = vld [vmem:[%s3 + $0x3d8] sm:$0xff]
  %v571 = vld [vmem:[%s3 + $0x3e0] sm:$0xff]
  %v572 = vld [vmem:[%s3 + $0x3e8] sm:$0xff]
  %v573 = vld [vmem:[%s3 + $0x3f0] sm:$0xff]
  %v574 = vld [vmem:[%s3 + $0x3f8] sm:$0xff]
  %575 = vmatprep.subr.mxu0 %v448
  %576 = vmatpush1.msra.mxu0 %v447
  %577 = vmatprep.subr.mxu0 %v450
  %578 = vmatpush1.msra.mxu0 %v449
  %579 = vmatprep.subr.mxu0 %v452
  %580 = vmatpush1.msra.mxu0 %v451
  %581 = vmatprep.subr.mxu0 %v454
  %582 = vmatpush1.msra.mxu0 %v453
  %583 = vmatprep.subr.mxu0 %v456
  %584 = vmatpush1.msra.mxu0 %v455
  %585 = vmatprep.subr.mxu0 %v458
  %586 = vmatpush1.msra.mxu0 %v457
  %587 = vmatprep.subr.mxu0 %v460
  %588 = vmatpush1.msra.mxu0 %v459
  %589 = vmatprep.subr.mxu0 %v462
  %590 = vmatpush1.msra.mxu0 %v461
  %591 = vmatprep.subr.mxu0 %v464
  %592 = vmatpush1.msra.mxu0 %v463
  %593 = vmatprep.subr.mxu0 %v466
  %594 = vmatpush1.msra.mxu0 %v465
  %595 = vmatprep.subr.mxu0 %v468
  %596 = vmatpush1.msra.mxu0 %v467
  %597 = vmatprep.subr.mxu0 %v470
  %598 = vmatpush1.msra.mxu0 %v469
  %599 = vmatprep.subr.mxu0 %v472
  %600 = vmatpush1.msra.mxu0 %v471
  %601 = vmatprep.subr.mxu0 %v474
  %602 = vmatpush1.msra.mxu0 %v473
  %603 = vmatprep.subr.mxu0 %v476
  %604 = vmatpush1.msra.mxu0 %v475
  %605 = vmatprep.subr.mxu0 %v478
  %606 = vmatpush1.msra.mxu0 %v477
  %607 = vmatprep.subr.mxu0 %v480
  %608 = vmatpush1.msra.mxu0 %v479
  %609 = vmatprep.subr.mxu0 %v482
  %610 = vmatpush1.msra.mxu0 %v481
  %611 = vmatprep.subr.mxu0 %v484
  %612 = vmatpush1.msra.mxu0 %v483
  %613 = vmatprep.subr.mxu0 %v486
  %614 = vmatpush1.msra.mxu0 %v485
  %615 = vmatprep.subr.mxu0 %v488
  %616 = vmatpush1.msra.mxu0 %v487
  %617 = vmatprep.subr.mxu0 %v490
  %618 = vmatpush1.msra.mxu0 %v489
  %619 = vmatprep.subr.mxu0 %v492
  %620 = vmatpush1.msra.mxu0 %v491
  %621 = vmatprep.subr.mxu0 %v494
  %622 = vmatpush1.msra.mxu0 %v493
  %623 = vmatprep.subr.mxu0 %v496
  %624 = vmatpush1.msra.mxu0 %v495
  %625 = vmatprep.subr.mxu0 %v498
  %626 = vmatpush1.msra.mxu0 %v497
  %627 = vmatprep.subr.mxu0 %v500
  %628 = vmatpush1.msra.mxu0 %v499
  %629 = vmatprep.subr.mxu0 %v502
  %630 = vmatpush1.msra.mxu0 %v501
  %631 = vmatprep.subr.mxu0 %v504
  %632 = vmatpush1.msra.mxu0 %v503
  %633 = vmatprep.subr.mxu0 %v506
  %634 = vmatpush1.msra.mxu0 %v505
  %635 = vmatprep.subr.mxu0 %v508
  %636 = vmatpush1.msra.mxu0 %v507
  %637 = vmatprep.subr.mxu0 %v510
  %638 = vmatpush1.msra.mxu0 %v509
  %639 = vmatprep.mubr.f32.mxu0 %v436
  %640 = vmatmul.mubr.f32.gmra.mrb[0].mxu0 %v435
  %v641 = vpop.f32.mrb[0].mxu0
  %v642 = vadd.f32 0.0, %v641
  %v643 = vpop.f32.mrb[0].mxu0
  %v644 = vadd.f32 0.0, %v643
  %645 = vdwg.mxu0
  %646 = vmatprep.subr.mxu0 %v512
  %647 = vmatpush1.msra.mxu0 %v511
  %648 = vmatprep.subr.mxu0 %v514
  %649 = vmatpush1.msra.mxu0 %v513
  %650 = vmatprep.subr.mxu0 %v516
  %651 = vmatpush1.msra.mxu0 %v515
  %652 = vmatprep.subr.mxu0 %v518
  %653 = vmatpush1.msra.mxu0 %v517
  %654 = vmatprep.subr.mxu0 %v520
  %655 = vmatpush1.msra.mxu0 %v519
  %656 = vmatprep.subr.mxu0 %v522
  %657 = vmatpush1.msra.mxu0 %v521
  %658 = vmatprep.subr.mxu0 %v524
  %659 = vmatpush1.msra.mxu0 %v523
  %660 = vmatprep.subr.mxu0 %v526
  %661 = vmatpush1.msra.mxu0 %v525
  %662 = vmatprep.subr.mxu0 %v528
  %663 = vmatpush1.msra.mxu0 %v527
  %664 = vmatprep.subr.mxu0 %v530
  %665 = vmatpush1.msra.mxu0 %v529
  %666 = vmatprep.subr.mxu0 %v532
  %667 = vmatpush1.msra.mxu0 %v531
  %668 = vmatprep.subr.mxu0 %v534
  %669 = vmatpush1.msra.mxu0 %v533
  %670 = vmatprep.subr.mxu0 %v536
  %671 = vmatpush1.msra.mxu0 %v535
  %672 = vmatprep.subr.mxu0 %v538
  %673 = vmatpush1.msra.mxu0 %v537
  %674 = vmatprep.subr.mxu0 %v540
  %675 = vmatpush1.msra.mxu0 %v539
  %676 = vmatprep.subr.mxu0 %v542
  %677 = vmatpush1.msra.mxu0 %v541
  %678 = vmatprep.subr.mxu0 %v544
  %679 = vmatpush1.msra.mxu0 %v543
  %680 = vmatprep.subr.mxu0 %v546
  %681 = vmatpush1.msra.mxu0 %v545
  %682 = vmatprep.subr.mxu0 %v548
  %683 = vmatpush1.msra.mxu0 %v547
  %684 = vmatprep.subr.mxu0 %v550
  %685 = vmatpush1.msra.mxu0 %v549
  %686 = vmatprep.subr.mxu0 %v552
  %687 = vmatpush1.msra.mxu0 %v551
  %688 = vmatprep.subr.mxu0 %v554
  %689 = vmatpush1.msra.mxu0 %v553
  %690 = vmatprep.subr.mxu0 %v556
  %691 = vmatpush1.msra.mxu0 %v555
  %692 = vmatprep.subr.mxu0 %v558
  %693 = vmatpush1.msra.mxu0 %v557
  %694 = vmatprep.subr.mxu0 %v560
  %695 = vmatpush1.msra.mxu0 %v559
  %696 = vmatprep.subr.mxu0 %v562
  %697 = vmatpush1.msra.mxu0 %v561
  %698 = vmatprep.subr.mxu0 %v564
  %699 = vmatpush1.msra.mxu0 %v563
  %700 = vmatprep.subr.mxu0 %v566
  %701 = vmatpush1.msra.mxu0 %v565
  %702 = vmatprep.subr.mxu0 %v568
  %703 = vmatpush1.msra.mxu0 %v567
  %704 = vmatprep.subr.mxu0 %v570
  %705 = vmatpush1.msra.mxu0 %v569
  %706 = vmatprep.subr.mxu0 %v572
  %707 = vmatpush1.msra.mxu0 %v571
  %708 = vmatprep.subr.mxu0 %v574
  %709 = vmatpush1.msra.mxu0 %v573
  %710 = vmatprep.mubr.f32.mxu0 %v444
  %711 = vmatmul.mubr.f32.gmra.mrb[0].mxu0 %v443
  %v712 = vpop.f32.mrb[0].mxu0
  %v713 = vadd.f32 %v642, %v712
  %v714 = vpop.f32.mrb[0].mxu0
  %v715 = vadd.f32 %v644, %v714
  %716 = vdwg.mxu0
  %v717 = vxor.u32 %v713, 2147483648
  %v718 = vxor.u32 %v715, 2147483648
  %v719 = vmul.f32 %v717, 1.442695
  %v720 = vpow.pop %v719
  %v721 = vmul.f32 %v718, 1.442695
  %v722 = vpow.pop %v721
  %v723 = vadd.f32 %v720, 1.0
  %v724 = vadd.f32 %v722, 1.0
  %v725 = vrcp.pop %v723
  %v726 = vmul.f32 1.0, %v725
  %v727 = vrcp.pop %v724
  %v728 = vmul.f32 1.0, %v727
  %v731 = vcombine.low %v726, %v728
  %v733 = vunpack.c.l.s4 1966171168
  %v734 = vunpack.c.0.s8 %v733
  %v735 = vlaneseq
  %v736 = vshrl.u32 %v735, 7
  %v737 = vsub.s32 %v734, %v736
  %v738 = vrot.slane %v731, %v737
  %v739 = vcombine.high %v738, %v738
  %v741 = vunpack.c.l.s4 1966171168
  %v742 = vunpack.c.0.s8 %v741
  %v743 = vlaneseq
  %v744 = vshrl.u32 %v743, 7
  %v745 = vsub.s32 %v742, %v744
  %v746 = vrot.slane %v738, %v745
  %v748 = vunpack.c.l.s4 1966171168
  %v749 = vunpack.c.0.s8 %v748
  %v750 = vlaneseq
  %v751 = vshrl.u32 %v750, 7
  %v752 = vsub.s32 %v749, %v751
  %v753 = vrot.slane %v739, %v752
  %v754 = vlaneseq
  %v755 = vshrl.u32 %v754, 7
  %v756 = vsub.s32 0, %v755
  %v757 = vrot.slane %v746, %v756
  %v758 = vlaneseq
  %v759 = vshrl.u32 %v758, 7
  %v760 = vsub.s32 1, %v759
  %v761 = vrot.slane %v746, %v760
  %v762 = vlaneseq
  %v763 = vshrl.u32 %v762, 7
  %v764 = vsub.s32 0, %v763
  %v765 = vrot.slane %v753, %v764
  %v766 = vlaneseq
  %v767 = vshrl.u32 %v766, 7
  %v768 = vsub.s32 1, %v767
  %v769 = vrot.slane %v753, %v768
  %v774 = vmul.f32 %v362, %v757
  %v775 = vmul.f32 %v363, %v761
  %v776 = vmul.f32 %v364, %v757
  %v777 = vmul.f32 %v365, %v761
  %v778 = vmul.f32 %v366, %v765
  %v779 = vmul.f32 %v367, %v769
  %v780 = vmul.f32 %v368, %v765
  %v781 = vmul.f32 %v369, %v769
  %782 = vst [vmem:[%s4] sm:$0xff] %v774
  %783 = vst [vmem:[%s4 + $0x8] sm:$0xff] %v775
  %784 = vst [vmem:[%s4 + $0x10] sm:$0xff] %v776
  %785 = vst [vmem:[%s4 + $0x18] sm:$0xff] %v777
  %786 = vst [vmem:[%s4 + $0x20] sm:$0xff] %v778
  %787 = vst [vmem:[%s4 + $0x28] sm:$0xff] %v779
  %788 = vst [vmem:[%s4 + $0x30] sm:$0xff] %v780
  %789 = vst [vmem:[%s4 + $0x38] sm:$0xff] %v781
  // Predicated region
  $region18: #{cbam_forward.1} parent=0 // pred_check
    _
  $region19: #{cbam_forward.1} parent=0 // pred_check_branch
    %791 = sbr.rel (0) target = $region21
  $region20: #{cbam_forward.1} parent=0 // pred_region
    _
  $region21: #{cbam_forward.1} parent=0 // pred_fallthru
    _
  // Predicated region
  $region22: #{cbam_forward.1} parent=0 // pred_check
    _
  $region23: #{cbam_forward.1} parent=0 // pred_check_branch
    %793 = sbr.rel (0) target = $region25
  $region24: #{cbam_forward.1} parent=0 // pred_region
    _
  $region25: #{cbam_forward.1} parent=0 // pred_fallthru
    _

</llo_original>
